<compile_context>
chip_gen: v7x
topology: tpu7x:2x2x1
jax: 0.10.0
libtpu: 0.0.40
codegen_flags: <defaults>
</compile_context>

<pallas_src>
import jax
import jax.numpy as jnp
from jax.experimental import pallas as pl
from jax.experimental.pallas import tpu as pltpu


# ------------------------------- fused kernel ------------------------------- #

def fused_net_kernel(xT_ref, wct_ref, w1t_ref, w2t_ref, pcol_ref, o_ref):
    """Fused Conv1d(1->C,K)+ReLU -> Linear+ReLU -> Linear+ReLU -> Linear(->1).

    Batch lives on the lane axis; every layer is a (rows, bt) slab on the MXU.

    xT_ref  : (L, bt)       input tile, batch on lanes
    wct_ref : (F, L)        Toeplitz conv weight, F = C_out * L_out
    w1t_ref : (H1, F)       fc1 weight, transposed to (out, in)
    w2t_ref : (H2, H1)      fc2 weight, transposed to (out, in)
    pcol_ref: (P, 1)        packed column: [conv bias (F); b1 (H1); b2 (H2);
                             w_out (H2); b_out (1); pad]
    o_ref   : (1, bt)       lane-dense output row
    """
    f_dim = wct_ref.shape[0]
    h1_dim = w1t_ref.shape[0]
    h2_dim = w2t_ref.shape[0]

    xT = xT_ref[...]
    p = pcol_ref[...]
    o0 = f_dim
    o1 = f_dim + h1_dim
    o2 = f_dim + h1_dim + h2_dim
    o3 = f_dim + h1_dim + 2 * h2_dim
    bc = p[0:o0]            # (F, 1)  conv bias, repeated per output position
    b1 = p[o0:o1]           # (H1, 1)
    b2 = p[o1:o2]           # (H2, 1)
    w3 = p[o2:o3]           # (H2, 1) final layer weight (column)
    b3 = p[o3:o3 + 1]       # (1, 1)

    # Conv1d(C_in=1, K) as a single MXU matmul against the Toeplitz weight.
    # Row ordering of `feat` (channel-major, then output position) matches
    # torch's x.view(B, -1) exactly.
    feat = jnp.maximum(
        jnp.dot(wct_ref[...], xT, preferred_element_type=jnp.float32) + bc, 0.0)
    h1 = jnp.maximum(
        jnp.dot(w1t_ref[...], feat, preferred_element_type=jnp.float32) + b1, 0.0)
    h2 = jnp.maximum(
        jnp.dot(w2t_ref[...], h1, preferred_element_type=jnp.float32) + b2, 0.0)
    # Final Linear(H2 -> 1): broadcast-mul + cross-sublane reduce (XLU slot)
    # instead of an M=1 MXU matmul; result is already a lane-dense (1, bt) row.
    o_ref[...] = jnp.sum(h2 * w3, axis=0, keepdims=True) + b3


# ------------------------------ Python wrapper ------------------------------ #

def _round_up(x, m):
    return ((x + m - 1) // m) * m


def _toeplitz_conv_weight(w_conv, l_out):
    """wct[c*l_out + j, i] = w_conv[c, i - j] (0 elsewhere); shape (C_out*L_out, L)."""
    c_out, k_size = w_conv.shape
    L = l_out + k_size - 1
    i_idx = jnp.arange(L)[None, :]              # (1, L)
    j_idx = jnp.arange(l_out)[:, None]          # (L_out, 1)
    tap = i_idx - j_idx                          # (L_out, L)
    valid = (tap >= 0) & (tap < k_size)
    tap_c = jnp.clip(tap, 0, k_size - 1)
    wct = jnp.where(valid[None, :, :], w_conv[:, tap_c], 0.0)   # (C_out, L_out, L)
    return wct.reshape(c_out * l_out, L)


def net_forward(x_ncw, params, *, batch_tile=1024):
    """x_ncw: (B, 1, L) float32, matching the PyTorch Conv1d NCW input."""
    x = x_ncw[:, 0, :].astype(jnp.float32)       # squeeze C_in=1 -> (B, L)
    B, L = x.shape

    w_conv, b_conv = params["w_conv"], params["b_conv"]
    w1, b1 = params["w_fc1"], params["b_fc1"]
    w2, b2 = params["w_fc2"], params["b_fc2"]
    w3, b3 = params["w_out"], params["b_out"]

    c_out, k_size = w_conv.shape
    l_out = L - k_size + 1
    f_dim = c_out * l_out
    h1_dim, h2_dim = w1.shape[1], w2.shape[1]
    assert w1.shape[0] == f_dim

    # ---- wrapper-side weight prep (tiny, runs once under jit) ----
    wct = _toeplitz_conv_weight(w_conv, l_out)                  # (F, L)
    w1t = w1.T                                                  # (H1, F)
    w2t = w2.T                                                  # (H2, H1)
    pcol = jnp.concatenate([
        jnp.repeat(b_conv, l_out),                              # (F,) channel-major
        b1.reshape(-1), b2.reshape(-1),
        w3.reshape(-1), b3.reshape(-1),
    ]).astype(jnp.float32)
    p_len = _round_up(pcol.shape[0], 8)
    pcol = jnp.pad(pcol, (0, p_len - pcol.shape[0])).reshape(p_len, 1)

    # ---- batch on lanes; >= 2 lane-aligned tiles at large B (v7x 2 TCs) ----
    xT = x.T                                                    # (L, B)
    if B <= 256:
        bt, b_pad = B, B                                        # one full-extent block
    else:
        bt = min(batch_tile, _round_up(pl.cdiv(B, 2), 128))     # >= 2 tiles, lane aligned
        b_pad = _round_up(B, bt)
    if b_pad != B:
        xT = jnp.pad(xT, ((0, 0), (0, b_pad - B)))
    n_tiles = b_pad // bt

    out_row = pl.pallas_call(
        fused_net_kernel,
        out_shape=jax.ShapeDtypeStruct((1, b_pad), jnp.float32),
        grid=(n_tiles,),
        in_specs=[
            pl.BlockSpec((L, bt), lambda i: (0, i)),            # x tile (batch on lanes)
            pl.BlockSpec((f_dim, L), lambda i: (0, 0)),         # Toeplitz conv weight
            pl.BlockSpec((h1_dim, f_dim), lambda i: (0, 0)),    # fc1 weight^T
            pl.BlockSpec((h2_dim, h1_dim), lambda i: (0, 0)),   # fc2 weight^T
            pl.BlockSpec((p_len, 1), lambda i: (0, 0)),         # packed biases + final layer
        ],
        out_specs=pl.BlockSpec((1, bt), lambda i: (0, i)),      # lane-dense output row
        compiler_params=pltpu.CompilerParams(
            dimension_semantics=("parallel",)),
    )(xT, wct, w1t, w2t, pcol)

    return out_row[0, :B].reshape(B, 1)


# --------------------------- pure-JAX reference ------------------------------ #

def net_forward_ref(x_ncw, params):
    x = x_ncw[:, 0, :]
    w_conv, b_conv = params["w_conv"], params["b_conv"]
    c_out, k_size = w_conv.shape
    L = x.shape[1]
    l_out = L - k_size + 1
    cols = jnp.stack([x[:, i:i + l_out] for i in range(k_size)], axis=-1)  # (B, L_out, K)
    conv = jnp.einsum("blk,ck->bcl", cols, w_conv) + b_conv[None, :, None]
    conv = jnp.maximum(conv, 0.0)
    feat = conv.reshape(x.shape[0], -1)                                    # torch x.view(B, -1)
    h1 = jnp.maximum(feat @ params["w_fc1"] + params["b_fc1"], 0.0)
    h2 = jnp.maximum(h1 @ params["w_fc2"] + params["b_fc2"], 0.0)
    return h2 @ params["w_out"] + params["b_out"]


# --------------------------- deterministic init ----------------------------- #

def xavier_uniform(key, shape, fan_in, fan_out):
    bound = jnp.sqrt(6.0 / (fan_in + fan_out))
    return jax.random.uniform(key, shape, jnp.float32, -bound, bound)


def init_params(key, input_dim, c_out=16, k_size=3, h1=32, h2=32):
    l_out = input_dim - k_size + 1
    feat_dim = c_out * l_out
    keys = jax.random.split(key, 8)
    # Conv1d weight: torch (C_out, 1, K) stored as (C_out, K).
    w_conv = xavier_uniform(keys[0], (c_out, k_size), fan_in=k_size, fan_out=c_out * k_size)
    # Linear weights stored (in, out) == torch weight.T.
    w_fc1 = xavier_uniform(keys[1], (feat_dim, h1), fan_in=feat_dim, fan_out=h1)
    w_fc2 = xavier_uniform(keys[2], (h1, h2), fan_in=h1, fan_out=h2)
    w_out = xavier_uniform(keys[3], (h2, 1), fan_in=h2, fan_out=1)
    # Torch zeroes biases; use small nonzero values here to exercise bias paths.
    b_conv = 0.1 * jax.random.normal(keys[4], (c_out,), jnp.float32)
    b_fc1 = 0.1 * jax.random.normal(keys[5], (h1,), jnp.float32)
    b_fc2 = 0.1 * jax.random.normal(keys[6], (h2,), jnp.float32)
    b_out = 0.1 * jax.random.normal(keys[7], (1,), jnp.float32)
    return dict(w_conv=w_conv, b_conv=b_conv, w_fc1=w_fc1, b_fc1=b_fc1,
                w_fc2=w_fc2, b_fc2=b_fc2, w_out=w_out, b_out=b_out)


# ---------------------------------- main ------------------------------------ #

if __name__ == "__main__":
    key = jax.random.PRNGKey(0)
    kx, kp, kx2 = jax.random.split(key, 3)

    B, input_dim = 2, 16
    x = jax.random.normal(kx, (B, 1, input_dim), jnp.float32)   # PyTorch NCW input
    params = init_params(kp, input_dim)

    fwd = jax.jit(net_forward)
    ref = jax.jit(net_forward_ref)

    out = jax.block_until_ready(fwd(x, params))
    assert out.shape == (B, 1) and out.dtype == jnp.float32
    r = jax.block_until_ready(ref(x, params))
    err = float(jnp.max(jnp.abs(out - r)))
    assert err < 1e-4, f"mismatch vs reference (small batch): {err}"

    # Exercise the multi-tile (padded, >=2 grid steps) path as well.
    B2 = 300
    x2 = jax.random.normal(kx2, (B2, 1, input_dim), jnp.float32)
    out2 = jax.block_until_ready(fwd(x2, params))
    r2 = jax.block_until_ready(ref(x2, params))
    assert out2.shape == (B2, 1)
    err2 = float(jnp.max(jnp.abs(out2 - r2)))
    assert err2 < 1e-4, f"mismatch vs reference (tiled batch): {err2}"

    print("KERNEL_OK")
</pallas_src>

<mosaic_0001>
module attributes {stable_mosaic.version = 11 : i64} {
  func.func @fused_net_kernel(%arg0: i32, %arg1: memref<16x2xf32, #tpu.memory_space<vmem>>, %arg2: memref<224x16xf32, #tpu.memory_space<vmem>>, %arg3: memref<32x224xf32, #tpu.memory_space<vmem>>, %arg4: memref<32x32xf32, #tpu.memory_space<vmem>>, %arg5: memref<328x1xf32, #tpu.memory_space<vmem>>, %arg6: memref<1x2xf32, #tpu.memory_space<vmem>>) attributes {dimension_semantics = [#tpu.dimension_semantics<parallel>], iteration_bounds = array<i64: 1>, scalar_prefetch = 0 : i64, scratch_operands = 0 : i64, tpu.core_type = #tpu.core_type<tc>, window_params = [{transform_indices = @transform_0, window_bounds = array<i64: 16, 2>}, {pipeline_mode = #tpu.pipeline_mode<synchronous>, transform_indices = @transform_1, window_bounds = array<i64: 224, 16>}, {pipeline_mode = #tpu.pipeline_mode<synchronous>, transform_indices = @transform_2, window_bounds = array<i64: 32, 224>}, {pipeline_mode = #tpu.pipeline_mode<synchronous>, transform_indices = @transform_3, window_bounds = array<i64: 32, 32>}, {pipeline_mode = #tpu.pipeline_mode<synchronous>, transform_indices = @transform_4, window_bounds = array<i64: 328, 1>}, {transform_indices = @transform_5, window_bounds = array<i64: 1, 2>}]} {
    %c0 = arith.constant 0 : index
    %c0_0 = arith.constant 0 : index
    %0 = vector.load %arg1[%c0, %c0_0] : memref<16x2xf32, #tpu.memory_space<vmem>>, vector<16x2xf32>
    %c0_1 = arith.constant 0 : index
    %c0_2 = arith.constant 0 : index
    %1 = vector.load %arg5[%c0_1, %c0_2] : memref<328x1xf32, #tpu.memory_space<vmem>>, vector<328x1xf32>
    %2 = vector.extract_strided_slice %1 {offsets = [0, 0], sizes = [224, 1], strides = [1, 1]} : vector<328x1xf32> to vector<224x1xf32>
    %3 = vector.extract_strided_slice %1 {offsets = [224, 0], sizes = [32, 1], strides = [1, 1]} : vector<328x1xf32> to vector<32x1xf32>
    %4 = vector.extract_strided_slice %1 {offsets = [256, 0], sizes = [32, 1], strides = [1, 1]} : vector<328x1xf32> to vector<32x1xf32>
    %5 = vector.extract_strided_slice %1 {offsets = [288, 0], sizes = [32, 1], strides = [1, 1]} : vector<328x1xf32> to vector<32x1xf32>
    %6 = vector.extract_strided_slice %1 {offsets = [320, 0], sizes = [1, 1], strides = [1, 1]} : vector<328x1xf32> to vector<1x1xf32>
    %c0_3 = arith.constant 0 : index
    %c0_4 = arith.constant 0 : index
    %7 = vector.load %arg2[%c0_3, %c0_4] : memref<224x16xf32, #tpu.memory_space<vmem>>, vector<224x16xf32>
    %cst = arith.constant dense<0.000000e+00> : vector<224x2xf32>
    %8 = tpu.matmul %7, %0, %cst {dimension_numbers = #tpu.dot_dimension_numbers<[1], [0], [0], [1], [0, 0, 1, 1], [], []>} : vector<224x16xf32>, vector<16x2xf32>, vector<224x2xf32> -> vector<224x2xf32>
    %9 = vector.broadcast %2 : vector<224x1xf32> to vector<224x2xf32>
    %10 = arith.addf %8, %9 : vector<224x2xf32>
    %cst_5 = arith.constant 0.000000e+00 : f32
    %11 = vector.broadcast %cst_5 : f32 to vector<224x2xf32>
    %12 = arith.maximumf %10, %11 : vector<224x2xf32>
    %c0_6 = arith.constant 0 : index
    %c0_7 = arith.constant 0 : index
    %13 = vector.load %arg3[%c0_6, %c0_7] : memref<32x224xf32, #tpu.memory_space<vmem>>, vector<32x224xf32>
    %cst_8 = arith.constant dense<0.000000e+00> : vector<32x2xf32>
    %14 = tpu.matmul %13, %12, %cst_8 {dimension_numbers = #tpu.dot_dimension_numbers<[1], [0], [0], [1], [0, 0, 1, 1], [], []>} : vector<32x224xf32>, vector<224x2xf32>, vector<32x2xf32> -> vector<32x2xf32>
    %15 = vector.broadcast %3 : vector<32x1xf32> to vector<32x2xf32>
    %16 = arith.addf %14, %15 : vector<32x2xf32>
    %cst_9 = arith.constant 0.000000e+00 : f32
    %17 = vector.broadcast %cst_9 : f32 to vector<32x2xf32>
    %18 = arith.maximumf %16, %17 : vector<32x2xf32>
    %c0_10 = arith.constant 0 : index
    %c0_11 = arith.constant 0 : index
    %19 = vector.load %arg4[%c0_10, %c0_11] : memref<32x32xf32, #tpu.memory_space<vmem>>, vector<32x32xf32>
    %cst_12 = arith.constant dense<0.000000e+00> : vector<32x2xf32>
    %20 = tpu.matmul %19, %18, %cst_12 {dimension_numbers = #tpu.dot_dimension_numbers<[1], [0], [0], [1], [0, 0, 1, 1], [], []>} : vector<32x32xf32>, vector<32x2xf32>, vector<32x2xf32> -> vector<32x2xf32>
    %21 = vector.broadcast %4 : vector<32x1xf32> to vector<32x2xf32>
    %22 = arith.addf %20, %21 : vector<32x2xf32>
    %cst_13 = arith.constant 0.000000e+00 : f32
    %23 = vector.broadcast %cst_13 : f32 to vector<32x2xf32>
    %24 = arith.maximumf %22, %23 : vector<32x2xf32>
    %25 = vector.broadcast %5 : vector<32x1xf32> to vector<32x2xf32>
    %26 = arith.mulf %24, %25 : vector<32x2xf32>
    %cst_14 = arith.constant dense<0.000000e+00> : vector<2xf32>
    %27 = vector.multi_reduction <add>, %26, %cst_14 [0] : vector<32x2xf32> to vector<2xf32>
    %28 = vector.shape_cast %27 : vector<2xf32> to vector<1x2xf32>
    %29 = vector.broadcast %6 : vector<1x1xf32> to vector<1x2xf32>
    %30 = arith.addf %28, %29 : vector<1x2xf32>
    %c0_15 = arith.constant 0 : index
    %c0_16 = arith.constant 0 : index
    %31 = vector.load %arg6[%c0_15, %c0_16] : memref<1x2xf32, #tpu.memory_space<vmem>>, vector<1x2xf32>
    tpu.vector_store %arg6[%c0_15, %c0_16], %30 {strides = array<i32>} : memref<1x2xf32, #tpu.memory_space<vmem>>, vector<1x2xf32>,
    return
  }
  func.func @transform_0(%arg0: i32) -> (i32, i32) {
    %c0_i32 = arith.constant 0 : i32
    %c0_i32_0 = arith.constant 0 : i32
    return %c0_i32, %arg0 : i32, i32
  }
  func.func @transform_1(%arg0: i32) -> (i32, i32) {
    %c0_i32 = arith.constant 0 : i32
    %c0_i32_0 = arith.constant 0 : i32
    %c0_i32_1 = arith.constant 0 : i32
    return %c0_i32, %c0_i32_0 : i32, i32
  }
  func.func @transform_2(%arg0: i32) -> (i32, i32) {
    %c0_i32 = arith.constant 0 : i32
    %c0_i32_0 = arith.constant 0 : i32
    %c0_i32_1 = arith.constant 0 : i32
    return %c0_i32, %c0_i32_0 : i32, i32
  }
  func.func @transform_3(%arg0: i32) -> (i32, i32) {
    %c0_i32 = arith.constant 0 : i32
    %c0_i32_0 = arith.constant 0 : i32
    %c0_i32_1 = arith.constant 0 : i32
    return %c0_i32, %c0_i32_0 : i32, i32
  }
  func.func @transform_4(%arg0: i32) -> (i32, i32) {
    %c0_i32 = arith.constant 0 : i32
    %c0_i32_0 = arith.constant 0 : i32
    %c0_i32_1 = arith.constant 0 : i32
    return %c0_i32, %c0_i32_0 : i32, i32
  }
  func.func @transform_5(%arg0: i32) -> (i32, i32) {
    %c0_i32 = arith.constant 0 : i32
    %c0_i32_0 = arith.constant 0 : i32
    return %c0_i32, %arg0 : i32, i32
  }
}

</mosaic_0001>

<llo_original>
// kernel: net_forward.1
$region0: #{net_forward.1}
  #allocation0 [shape = 'u32[]', space=smem, size = 0x4, offset = 0x4, fixed_abs, tag = 'smem constant byte address 0x4 - core index']
  #allocation1 [shape = 'u32[144,128]{1,0:T(1,128)}', space=vmem, size = 0x12000, scoped, tag = 'internal scratch']
  %s0 = inlined_call_operand.vmem [shape: f32[16,2], index: 0, kind: input, shape index: {}]
  %s1 = inlined_call_operand.vmem [shape: f32[224,16], index: 1, kind: input, shape index: {}]
  %s2 = inlined_call_operand.vmem [shape: f32[32,224], index: 2, kind: input, shape index: {}]
  %s3 = inlined_call_operand.vmem [shape: f32[32,32], index: 3, kind: input, shape index: {}]
  %s4 = inlined_call_operand.vmem [shape: f32[328,1], index: 4, kind: input, shape index: {}]
  %s5 = inlined_call_operand.hbm [shape: f32[1,2], index: 5, kind: output, shape index: {}]
  %s6 = sld [smem:[#allocation0]]
  $region30: #{net_forward.1} parent=0
    _
  %s8 = ssub.s32 1, %s6
  %s9 = scalar_select 0, %s8, %s6
  $region1: #{net_forward.1} parent=0
    #allocation2 [shape = 'u8[512]{0}', space=vmem, size = 0x400, scoped, tag = 'output window, operand 0, single buffered']
    #allocation3 [shape = 's32[1]{0}', space=sflag, size = 0x4, scoped, tag = 'scoped memory for net_forward.1']
    %10 = vsyncpa [#allocation3], 0
    // Predicated region
    $region2: #{net_forward.1} parent=1 // pred_check
      _
    $region3: #{net_forward.1} parent=1 // pred_check_branch
      %12 = sbr.rel (0) target = $region5
    $region4: #{net_forward.1} parent=1 // pred_region
      _
    $region5: #{net_forward.1} parent=1 // pred_fallthru
      _
    // Predicated region
    $region6: #{net_forward.1} parent=1 // pred_check
      _
    $region7: #{net_forward.1} parent=1 // pred_check_branch
      %14 = sbr.rel (0) target = $region9
    $region8: #{net_forward.1} parent=1 // pred_region
      _
    $region9: #{net_forward.1} parent=1 // pred_fallthru
      _
    // Predicated region
    $region10: #{net_forward.1} parent=1 // pred_check
      _
    $region11: #{net_forward.1} parent=1 // pred_check_branch
      %16 = sbr.rel (0) target = $region13
    $region12: #{net_forward.1} parent=1 // pred_region
      _
    $region13: #{net_forward.1} parent=1 // pred_fallthru
      _
    // Predicated region
    $region14: #{net_forward.1} parent=1 // pred_check
      _
    $region15: #{net_forward.1} parent=1 // pred_check_branch
      %18 = sbr.rel (0) target = $region17
    $region16: #{net_forward.1} parent=1 // pred_region
      _
    $region17: #{net_forward.1} parent=1 // pred_fallthru
      _
    // Predicated region
    $region18: #{net_forward.1} parent=1 // pred_check
      _
    $region19: #{net_forward.1} parent=1 // pred_check_branch
      %20 = sbr.rel (0) target = $region21
    $region20: #{net_forward.1} parent=1 // pred_region
      _
    $region21: #{net_forward.1} parent=1 // pred_fallthru
      _
    %v21 = vld [vmem:[%s0] sm:$0xff]
    %v22 = vld [vmem:[%s0 + $0x8] sm:$0xff]
    %v23 = vld [vmem:[%s4] sm:$0xff]
    %v24 = vld [vmem:[%s4 + $0x8] sm:$0xff]
    %v25 = vld [vmem:[%s4 + $0x10] sm:$0xff]
    %v26 = vld [vmem:[%s4 + $0x18] sm:$0xff]
    %v27 = vld [vmem:[%s4 + $0x20] sm:$0xff]
    %v28 = vld [vmem:[%s4 + $0x28] sm:$0xff]
    %v29 = vld [vmem:[%s4 + $0x30] sm:$0xff]
    %v30 = vld [vmem:[%s4 + $0x38] sm:$0xff]
    %v31 = vld [vmem:[%s4 + $0x40] sm:$0xff]
    %v32 = vld [vmem:[%s4 + $0x48] sm:$0xff]
    %v33 = vld [vmem:[%s4 + $0x50] sm:$0xff]
    %v34 = vld [vmem:[%s4 + $0x58] sm:$0xff]
    %v35 = vld [vmem:[%s4 + $0x60] sm:$0xff]
    %v36 = vld [vmem:[%s4 + $0x68] sm:$0xff]
    %v37 = vld [vmem:[%s4 + $0x70] sm:$0xff]
    %v38 = vld [vmem:[%s4 + $0x78] sm:$0xff]
    %v39 = vld [vmem:[%s4 + $0x80] sm:$0xff]
    %v40 = vld [vmem:[%s4 + $0x88] sm:$0xff]
    %v41 = vld [vmem:[%s4 + $0x90] sm:$0xff]
    %v42 = vld [vmem:[%s4 + $0x98] sm:$0xff]
    %v43 = vld [vmem:[%s4 + $0xa0] sm:$0xff]
    %v44 = vld [vmem:[%s4 + $0xa8] sm:$0xff]
    %v45 = vld [vmem:[%s4 + $0xb0] sm:$0xff]
    %v46 = vld [vmem:[%s4 + $0xb8] sm:$0xff]
    %v47 = vld [vmem:[%s4 + $0xc0] sm:$0xff]
    %v48 = vld [vmem:[%s4 + $0xc8] sm:$0xff]
    %v49 = vld [vmem:[%s4 + $0xd0] sm:$0xff]
    %v50 = vld [vmem:[%s4 + $0xd8] sm:$0xff]
    %v51 = vld [vmem:[%s4 + $0xe0] sm:$0xff]
    %v52 = vld [vmem:[%s4 + $0xe8] sm:$0xff]
    %v53 = vld [vmem:[%s4 + $0xf0] sm:$0xff]
    %v54 = vld [vmem:[%s4 + $0xf8] sm:$0xff]
    %v55 = vld [vmem:[%s4 + $0x100] sm:$0xff]
    %v56 = vld [vmem:[%s4 + $0x108] sm:$0xff]
    %v57 = vld [vmem:[%s4 + $0x110] sm:$0xff]
    %v58 = vld [vmem:[%s4 + $0x118] sm:$0xff]
    %v59 = vld [vmem:[%s4 + $0x120] sm:$0xff]
    %v60 = vld [vmem:[%s4 + $0x128] sm:$0xff]
    %v61 = vld [vmem:[%s4 + $0x130] sm:$0xff]
    %v62 = vld [vmem:[%s4 + $0x138] sm:$0xff]
    %v63 = vld [vmem:[%s4 + $0x140] sm:$0xff]
    %v64 = vld [vmem:[%s1] sm:$0xff]
    %v65 = vld [vmem:[%s1 + $0x8] sm:$0xff]
    %v66 = vld [vmem:[%s1 + $0x10] sm:$0xff]
    %v67 = vld [vmem:[%s1 + $0x18] sm:$0xff]
    %v68 = vld [vmem:[%s1 + $0x20] sm:$0xff]
    %v69 = vld [vmem:[%s1 + $0x28] sm:$0xff]
    %v70 = vld [vmem:[%s1 + $0x30] sm:$0xff]
    %v71 = vld [vmem:[%s1 + $0x38] sm:$0xff]
    %v72 = vld [vmem:[%s1 + $0x40] sm:$0xff]
    %v73 = vld [vmem:[%s1 + $0x48] sm:$0xff]
    %v74 = vld [vmem:[%s1 + $0x50] sm:$0xff]
    %v75 = vld [vmem:[%s1 + $0x58] sm:$0xff]
    %v76 = vld [vmem:[%s1 + $0x60] sm:$0xff]
    %v77 = vld [vmem:[%s1 + $0x68] sm:$0xff]
    %v78 = vld [vmem:[%s1 + $0x70] sm:$0xff]
    %v79 = vld [vmem:[%s1 + $0x78] sm:$0xff]
    %v80 = vld [vmem:[%s1 + $0x80] sm:$0xff]
    %v81 = vld [vmem:[%s1 + $0x88] sm:$0xff]
    %v82 = vld [vmem:[%s1 + $0x90] sm:$0xff]
    %v83 = vld [vmem:[%s1 + $0x98] sm:$0xff]
    %v84 = vld [vmem:[%s1 + $0xa0] sm:$0xff]
    %v85 = vld [vmem:[%s1 + $0xa8] sm:$0xff]
    %v86 = vld [vmem:[%s1 + $0xb0] sm:$0xff]
    %v87 = vld [vmem:[%s1 + $0xb8] sm:$0xff]
    %v88 = vld [vmem:[%s1 + $0xc0] sm:$0xff]
    %v89 = vld [vmem:[%s1 + $0xc8] sm:$0xff]
    %v90 = vld [vmem:[%s1 + $0xd0] sm:$0xff]
    %v91 = vld [vmem:[%s1 + $0xd8] sm:$0xff]
    %93 = vset.pattern.permute.xlu0 0
    %94 = vperm.xlu0 %93, %v23
    %v95 = vpop.permute.xlu0 %94
    %98 = vset.pattern.permute.xlu0 0
    %99 = vperm.xlu0 %98, %v24
    %v100 = vpop.permute.xlu0 %99
    %103 = vset.pattern.permute.xlu0 0
    %104 = vperm.xlu0 %103, %v25
    %v105 = vpop.permute.xlu0 %104
    %108 = vset.pattern.permute.xlu0 0
    %109 = vperm.xlu0 %108, %v26
    %v110 = vpop.permute.xlu0 %109
    %113 = vset.pattern.permute.xlu0 0
    %114 = vperm.xlu0 %113, %v27
    %v115 = vpop.permute.xlu0 %114
    %118 = vset.pattern.permute.xlu0 0
    %119 = vperm.xlu0 %118, %v28
    %v120 = vpop.permute.xlu0 %119
    %123 = vset.pattern.permute.xlu0 0
    %124 = vperm.xlu0 %123, %v29
    %v125 = vpop.permute.xlu0 %124
    %128 = vset.pattern.permute.xlu0 0
    %129 = vperm.xlu0 %128, %v30
    %v130 = vpop.permute.xlu0 %129
    %133 = vset.pattern.permute.xlu0 0
    %134 = vperm.xlu0 %133, %v31
    %v135 = vpop.permute.xlu0 %134
    %138 = vset.pattern.permute.xlu0 0
    %139 = vperm.xlu0 %138, %v32
    %v140 = vpop.permute.xlu0 %139
    %143 = vset.pattern.permute.xlu0 0
    %144 = vperm.xlu0 %143, %v33
    %v145 = vpop.permute.xlu0 %144
    %148 = vset.pattern.permute.xlu0 0
    %149 = vperm.xlu0 %148, %v34
    %v150 = vpop.permute.xlu0 %149
    %153 = vset.pattern.permute.xlu0 0
    %154 = vperm.xlu0 %153, %v35
    %v155 = vpop.permute.xlu0 %154
    %158 = vset.pattern.permute.xlu0 0
    %159 = vperm.xlu0 %158, %v36
    %v160 = vpop.permute.xlu0 %159
    %163 = vset.pattern.permute.xlu0 0
    %164 = vperm.xlu0 %163, %v37
    %v165 = vpop.permute.xlu0 %164
    %168 = vset.pattern.permute.xlu0 0
    %169 = vperm.xlu0 %168, %v38
    %v170 = vpop.permute.xlu0 %169
    %173 = vset.pattern.permute.xlu0 0
    %174 = vperm.xlu0 %173, %v39
    %v175 = vpop.permute.xlu0 %174
    %178 = vset.pattern.permute.xlu0 0
    %179 = vperm.xlu0 %178, %v40
    %v180 = vpop.permute.xlu0 %179
    %183 = vset.pattern.permute.xlu0 0
    %184 = vperm.xlu0 %183, %v41
    %v185 = vpop.permute.xlu0 %184
    %188 = vset.pattern.permute.xlu0 0
    %189 = vperm.xlu0 %188, %v42
    %v190 = vpop.permute.xlu0 %189
    %193 = vset.pattern.permute.xlu0 0
    %194 = vperm.xlu0 %193, %v43
    %v195 = vpop.permute.xlu0 %194
    %198 = vset.pattern.permute.xlu0 0
    %199 = vperm.xlu0 %198, %v44
    %v200 = vpop.permute.xlu0 %199
    %203 = vset.pattern.permute.xlu0 0
    %204 = vperm.xlu0 %203, %v45
    %v205 = vpop.permute.xlu0 %204
    %208 = vset.pattern.permute.xlu0 0
    %209 = vperm.xlu0 %208, %v46
    %v210 = vpop.permute.xlu0 %209
    %213 = vset.pattern.permute.xlu0 0
    %214 = vperm.xlu0 %213, %v47
    %v215 = vpop.permute.xlu0 %214
    %218 = vset.pattern.permute.xlu0 0
    %219 = vperm.xlu0 %218, %v48
    %v220 = vpop.permute.xlu0 %219
    %223 = vset.pattern.permute.xlu0 0
    %224 = vperm.xlu0 %223, %v49
    %v225 = vpop.permute.xlu0 %224
    %228 = vset.pattern.permute.xlu0 0
    %229 = vperm.xlu0 %228, %v50
    %v230 = vpop.permute.xlu0 %229
    %vm232 = vcmask 130048
    %v234 = vsel %vm232, %v64, 0
    %v237 = vsel %vm232, %v65, 0
    %v240 = vsel %vm232, %v66, 0
    %v243 = vsel %vm232, %v67, 0
    %v246 = vsel %vm232, %v68, 0
    %v249 = vsel %vm232, %v69, 0
    %v252 = vsel %vm232, %v70, 0
    %v255 = vsel %vm232, %v71, 0
    %v258 = vsel %vm232, %v72, 0
    %v261 = vsel %vm232, %v73, 0
    %v264 = vsel %vm232, %v74, 0
    %v267 = vsel %vm232, %v75, 0
    %v270 = vsel %vm232, %v76, 0
    %v273 = vsel %vm232, %v77, 0
    %v276 = vsel %vm232, %v78, 0
    %v279 = vsel %vm232, %v79, 0
    %v282 = vsel %vm232, %v80, 0
    %v285 = vsel %vm232, %v81, 0
    %v288 = vsel %vm232, %v82, 0
    %v291 = vsel %vm232, %v83, 0
    %v294 = vsel %vm232, %v84, 0
    %v297 = vsel %vm232, %v85, 0
    %v300 = vsel %vm232, %v86, 0
    %v303 = vsel %vm232, %v87, 0
    %v306 = vsel %vm232, %v88, 0
    %v309 = vsel %vm232, %v89, 0
    %v312 = vsel %vm232, %v90, 0
    %v315 = vsel %vm232, %v91, 0
    %317 = vmatprep.subr.mxu0 0.0
    %318 = vmatpush1.msra.mxu0 %v21
    %319 = vmatprep.subr.mxu0 0.0
    %320 = vmatpush1.msra.mxu0 %v22
    %321 = vmatprep.subr.mxu0 0.0
    %322 = vmatpush1.msra.mxu0 0.0
    %323 = vmatprep.subr.mxu0 0.0
    %324 = vmatpush1.msra.mxu0 0.0
    %325 = vmatprep.subr.mxu0 0.0
    %326 = vmatpush1.msra.mxu0 0.0
    %327 = vmatprep.subr.mxu0 0.0
    %328 = vmatpush1.msra.mxu0 0.0
    %329 = vmatprep.subr.mxu0 0.0
    %330 = vmatpush1.msra.mxu0 0.0
    %331 = vmatprep.subr.mxu0 0.0
    %332 = vmatpush1.msra.mxu0 0.0
    %333 = vmatprep.subr.mxu0 0.0
    %334 = vmatpush1.msra.mxu0 0.0
    %335 = vmatprep.subr.mxu0 0.0
    %336 = vmatpush1.msra.mxu0 0.0
    %337 = vmatprep.subr.mxu0 0.0
    %338 = vmatpush1.msra.mxu0 0.0
    %339 = vmatprep.subr.mxu0 0.0
    %340 = vmatpush1.msra.mxu0 0.0
    %341 = vmatprep.subr.mxu0 0.0
    %342 = vmatpush1.msra.mxu0 0.0
    %343 = vmatprep.subr.mxu0 0.0
    %344 = vmatpush1.msra.mxu0 0.0
    %345 = vmatprep.subr.mxu0 0.0
    %346 = vmatpush1.msra.mxu0 0.0
    %347 = vmatprep.subr.mxu0 0.0
    %348 = vmatpush1.msra.mxu0 0.0
    %349 = vmatprep.subr.mxu0 0.0
    %350 = vmatpush1.msra.mxu0 0.0
    %351 = vmatprep.subr.mxu0 0.0
    %352 = vmatpush1.msra.mxu0 0.0
    %353 = vmatprep.subr.mxu0 0.0
    %354 = vmatpush1.msra.mxu0 0.0
    %355 = vmatprep.subr.mxu0 0.0
    %356 = vmatpush1.msra.mxu0 0.0
    %357 = vmatprep.subr.mxu0 0.0
    %358 = vmatpush1.msra.mxu0 0.0
    %359 = vmatprep.subr.mxu0 0.0
    %360 = vmatpush1.msra.mxu0 0.0
    %361 = vmatprep.subr.mxu0 0.0
    %362 = vmatpush1.msra.mxu0 0.0
    %363 = vmatprep.subr.mxu0 0.0
    %364 = vmatpush1.msra.mxu0 0.0
    %365 = vmatprep.subr.mxu0 0.0
    %366 = vmatpush1.msra.mxu0 0.0
    %367 = vmatprep.subr.mxu0 0.0
    %368 = vmatpush1.msra.mxu0 0.0
    %369 = vmatprep.subr.mxu0 0.0
    %370 = vmatpush1.msra.mxu0 0.0
    %371 = vmatprep.subr.mxu0 0.0
    %372 = vmatpush1.msra.mxu0 0.0
    %373 = vmatprep.subr.mxu0 0.0
    %374 = vmatpush1.msra.mxu0 0.0
    %375 = vmatprep.subr.mxu0 0.0
    %376 = vmatpush1.msra.mxu0 0.0
    %377 = vmatprep.subr.mxu0 0.0
    %378 = vmatpush1.msra.mxu0 0.0
    %379 = vmatprep.subr.mxu0 0.0
    %380 = vmatpush1.msra.mxu0 0.0
    %381 = vmatprep.mubr.f32.mxu0 0.0
    %382 = vmatmul.mubr.f32.gmra.mrb[0].mxu0 %v234
    %v383 = vpop.f32.mrb[0].mxu0
    %v384 = vadd.f32 %v95, %v383
    %v385 = vpop.f32.mrb[0].mxu0
    %386 = vmatprep.mubr.f32.mxu0 0.0
    %387 = vmatmul.mubr.f32.gmra.mrb[0].mxu0 %v237
    %v388 = vpop.f32.mrb[0].mxu0
    %v389 = vadd.f32 %v100, %v388
    %v390 = vpop.f32.mrb[0].mxu0
    %391 = vmatprep.mubr.f32.mxu0 0.0
    %392 = vmatmul.mubr.f32.gmra.mrb[0].mxu0 %v240
    %v393 = vpop.f32.mrb[0].mxu0
    %v394 = vadd.f32 %v105, %v393
    %v395 = vpop.f32.mrb[0].mxu0
    %396 = vmatprep.mubr.f32.mxu0 0.0
    %397 = vmatmul.mubr.f32.gmra.mrb[0].mxu0 %v243
    %v398 = vpop.f32.mrb[0].mxu0
    %v399 = vadd.f32 %v110, %v398
    %v400 = vpop.f32.mrb[0].mxu0
    %401 = vmatprep.mubr.f32.mxu0 0.0
    %402 = vmatmul.mubr.f32.gmra.mrb[0].mxu0 %v246
    %v403 = vpop.f32.mrb[0].mxu0
    %v404 = vadd.f32 %v115, %v403
    %v405 = vpop.f32.mrb[0].mxu0
    %406 = vmatprep.mubr.f32.mxu0 0.0
    %407 = vmatmul.mubr.f32.gmra.mrb[0].mxu0 %v249
    %v408 = vpop.f32.mrb[0].mxu0
    %v409 = vadd.f32 %v120, %v408
    %v410 = vpop.f32.mrb[0].mxu0
    %411 = vmatprep.mubr.f32.mxu0 0.0
    %412 = vmatmul.mubr.f32.gmra.mrb[0].mxu0 %v252
    %v413 = vpop.f32.mrb[0].mxu0
    %v414 = vadd.f32 %v125, %v413
    %v415 = vpop.f32.mrb[0].mxu0
    %416 = vmatprep.mubr.f32.mxu0 0.0
    %417 = vmatmul.mubr.f32.gmra.mrb[0].mxu0 %v255
    %v418 = vpop.f32.mrb[0].mxu0
    %v419 = vadd.f32 %v130, %v418
    %v420 = vpop.f32.mrb[0].mxu0
    %421 = vmatprep.mubr.f32.mxu0 0.0
    %422 = vmatmul.mubr.f32.gmra.mrb[0].mxu0 %v258
    %v423 = vpop.f32.mrb[0].mxu0
    %v424 = vadd.f32 %v135, %v423
    %v425 = vpop.f32.mrb[0].mxu0
    %426 = vmatprep.mubr.f32.mxu0 0.0
    %427 = vmatmul.mubr.f32.gmra.mrb[0].mxu0 %v261
    %v428 = vpop.f32.mrb[0].mxu0
    %v429 = vadd.f32 %v140, %v428
    %v430 = vpop.f32.mrb[0].mxu0
    %431 = vmatprep.mubr.f32.mxu0 0.0
    %432 = vmatmul.mubr.f32.gmra.mrb[0].mxu0 %v264
    %v433 = vpop.f32.mrb[0].mxu0
    %v434 = vadd.f32 %v145, %v433
    %v435 = vpop.f32.mrb[0].mxu0
    %436 = vmatprep.mubr.f32.mxu0 0.0
    %437 = vmatmul.mubr.f32.gmra.mrb[0].mxu0 %v267
    %v438 = vpop.f32.mrb[0].mxu0
    %v439 = vadd.f32 %v150, %v438
    %v440 = vpop.f32.mrb[0].mxu0
    %441 = vmatprep.mubr.f32.mxu0 0.0
    %442 = vmatmul.mubr.f32.gmra.mrb[0].mxu0 %v270
    %v443 = vpop.f32.mrb[0].mxu0
    %v444 = vadd.f32 %v155, %v443
    %v445 = vpop.f32.mrb[0].mxu0
    %446 = vmatprep.mubr.f32.mxu0 0.0
    %447 = vmatmul.mubr.f32.gmra.mrb[0].mxu0 %v273
    %v448 = vpop.f32.mrb[0].mxu0
    %v449 = vadd.f32 %v160, %v448
    %v450 = vpop.f32.mrb[0].mxu0
    %451 = vmatprep.mubr.f32.mxu0 0.0
    %452 = vmatmul.mubr.f32.gmra.mrb[0].mxu0 %v276
    %v453 = vpop.f32.mrb[0].mxu0
    %v454 = vadd.f32 %v165, %v453
    %v455 = vpop.f32.mrb[0].mxu0
    %456 = vmatprep.mubr.f32.mxu0 0.0
    %457 = vmatmul.mubr.f32.gmra.mrb[0].mxu0 %v279
    %v458 = vpop.f32.mrb[0].mxu0
    %v459 = vadd.f32 %v170, %v458
    %v460 = vpop.f32.mrb[0].mxu0
    %461 = vmatprep.mubr.f32.mxu0 0.0
    %462 = vmatmul.mubr.f32.gmra.mrb[0].mxu0 %v282
    %v463 = vpop.f32.mrb[0].mxu0
    %v464 = vadd.f32 %v175, %v463
    %v465 = vpop.f32.mrb[0].mxu0
    %466 = vmatprep.mubr.f32.mxu0 0.0
    %467 = vmatmul.mubr.f32.gmra.mrb[0].mxu0 %v285
    %v468 = vpop.f32.mrb[0].mxu0
    %v469 = vadd.f32 %v180, %v468
    %v470 = vpop.f32.mrb[0].mxu0
    %471 = vmatprep.mubr.f32.mxu0 0.0
    %472 = vmatmul.mubr.f32.gmra.mrb[0].mxu0 %v288
    %v473 = vpop.f32.mrb[0].mxu0
    %v474 = vadd.f32 %v185, %v473
    %v475 = vpop.f32.mrb[0].mxu0
    %476 = vmatprep.mubr.f32.mxu0 0.0
    %477 = vmatmul.mubr.f32.gmra.mrb[0].mxu0 %v291
    %v478 = vpop.f32.mrb[0].mxu0
    %v479 = vadd.f32 %v190, %v478
    %v480 = vpop.f32.mrb[0].mxu0
    %481 = vmatprep.mubr.f32.mxu0 0.0
    %482 = vmatmul.mubr.f32.gmra.mrb[0].mxu0 %v294
    %v483 = vpop.f32.mrb[0].mxu0
    %v484 = vadd.f32 %v195, %v483
    %v485 = vpop.f32.mrb[0].mxu0
    %486 = vmatprep.mubr.f32.mxu0 0.0
    %487 = vmatmul.mubr.f32.gmra.mrb[0].mxu0 %v297
    %v488 = vpop.f32.mrb[0].mxu0
    %v489 = vadd.f32 %v200, %v488
    %v490 = vpop.f32.mrb[0].mxu0
    %491 = vmatprep.mubr.f32.mxu0 0.0
    %492 = vmatmul.mubr.f32.gmra.mrb[0].mxu0 %v300
    %v493 = vpop.f32.mrb[0].mxu0
    %v494 = vadd.f32 %v205, %v493
    %v495 = vpop.f32.mrb[0].mxu0
    %496 = vmatprep.mubr.f32.mxu0 0.0
    %497 = vmatmul.mubr.f32.gmra.mrb[0].mxu0 %v303
    %v498 = vpop.f32.mrb[0].mxu0
    %v499 = vadd.f32 %v210, %v498
    %v500 = vpop.f32.mrb[0].mxu0
    %501 = vmatprep.mubr.f32.mxu0 0.0
    %502 = vmatmul.mubr.f32.gmra.mrb[0].mxu0 %v306
    %v503 = vpop.f32.mrb[0].mxu0
    %v504 = vadd.f32 %v215, %v503
    %v505 = vpop.f32.mrb[0].mxu0
    %506 = vmatprep.mubr.f32.mxu0 0.0
    %507 = vmatmul.mubr.f32.gmra.mrb[0].mxu0 %v309
    %v508 = vpop.f32.mrb[0].mxu0
    %v509 = vadd.f32 %v220, %v508
    %v510 = vpop.f32.mrb[0].mxu0
    %511 = vmatprep.mubr.f32.mxu0 0.0
    %512 = vmatmul.mubr.f32.gmra.mrb[0].mxu0 %v312
    %v513 = vpop.f32.mrb[0].mxu0
    %v514 = vadd.f32 %v225, %v513
    %v515 = vpop.f32.mrb[0].mxu0
    %516 = vmatprep.mubr.f32.mxu0 0.0
    %517 = vmatmul.mubr.f32.gmra.mrb[0].mxu0 %v315
    %v518 = vpop.f32.mrb[0].mxu0
    %v519 = vadd.f32 %v230, %v518
    %v520 = vpop.f32.mrb[0].mxu0
    %521 = vdwg.mxu0
    %v522 = vmax.f32 %v384, 0.0
    %v523 = vmax.f32 %v389, 0.0
    %v524 = vmax.f32 %v394, 0.0
    %v525 = vmax.f32 %v399, 0.0
    %v526 = vmax.f32 %v404, 0.0
    %v527 = vmax.f32 %v409, 0.0
    %v528 = vmax.f32 %v414, 0.0
    %v529 = vmax.f32 %v419, 0.0
    %v530 = vmax.f32 %v424, 0.0
    %v531 = vmax.f32 %v429, 0.0
    %v532 = vmax.f32 %v434, 0.0
    %v533 = vmax.f32 %v439, 0.0
    %v534 = vmax.f32 %v444, 0.0
    %v535 = vmax.f32 %v449, 0.0
    %v536 = vmax.f32 %v454, 0.0
    %v537 = vmax.f32 %v459, 0.0
    %v538 = vmax.f32 %v464, 0.0
    %v539 = vmax.f32 %v469, 0.0
    %v540 = vmax.f32 %v474, 0.0
    %v541 = vmax.f32 %v479, 0.0
    %v542 = vmax.f32 %v484, 0.0
    %v543 = vmax.f32 %v489, 0.0
    %v544 = vmax.f32 %v494, 0.0
    %v545 = vmax.f32 %v499, 0.0
    %v546 = vmax.f32 %v504, 0.0
    %v547 = vmax.f32 %v509, 0.0
    %v548 = vmax.f32 %v514, 0.0
    %v549 = vmax.f32 %v519, 0.0
    %v550 = vld [vmem:[%s2] sm:$0xff]
    %v551 = vld [vmem:[%s2 + $0x8] sm:$0xff]
    %v552 = vld [vmem:[%s2 + $0x10] sm:$0xff]
    %v553 = vld [vmem:[%s2 + $0x18] sm:$0xff]
    %v554 = vld [vmem:[%s2 + $0x20] sm:$0xff]
    %v555 = vld [vmem:[%s2 + $0x28] sm:$0xff]
    %v556 = vld [vmem:[%s2 + $0x30] sm:$0xff]
    %v557 = vld [vmem:[%s2 + $0x38] sm:$0xff]
    %559 = vset.pattern.permute.xlu0 0
    %560 = vperm.xlu0 %559, %v51
    %v561 = vpop.permute.xlu0 %560
    %564 = vset.pattern.permute.xlu0 0
    %565 = vperm.xlu0 %564, %v52
    %v566 = vpop.permute.xlu0 %565
    %569 = vset.pattern.permute.xlu0 0
    %570 = vperm.xlu0 %569, %v53
    %v571 = vpop.permute.xlu0 %570
    %574 = vset.pattern.permute.xlu0 0
    %575 = vperm.xlu0 %574, %v54
    %v576 = vpop.permute.xlu0 %575
    %vm578 = vcmask 785408
    %v580 = vsel %vm578, %v551, 0
    %v583 = vsel %vm578, %v553, 0
    %v586 = vsel %vm578, %v555, 0
    %v589 = vsel %vm578, %v557, 0
    %591 = vmatprep.subr.mxu0 0.0
    %592 = vmatpush1.msra.mxu0 %v522
    %593 = vmatprep.subr.mxu0 0.0
    %594 = vmatpush1.msra.mxu0 %v523
    %595 = vmatprep.subr.mxu0 0.0
    %596 = vmatpush1.msra.mxu0 %v524
    %597 = vmatprep.subr.mxu0 0.0
    %598 = vmatpush1.msra.mxu0 %v525
    %599 = vmatprep.subr.mxu0 0.0
    %600 = vmatpush1.msra.mxu0 %v526
    %601 = vmatprep.subr.mxu0 0.0
    %602 = vmatpush1.msra.mxu0 %v527
    %603 = vmatprep.subr.mxu0 0.0
    %604 = vmatpush1.msra.mxu0 %v528
    %605 = vmatprep.subr.mxu0 0.0
    %606 = vmatpush1.msra.mxu0 %v529
    %607 = vmatprep.subr.mxu0 0.0
    %608 = vmatpush1.msra.mxu0 %v530
    %609 = vmatprep.subr.mxu0 0.0
    %610 = vmatpush1.msra.mxu0 %v531
    %611 = vmatprep.subr.mxu0 0.0
    %612 = vmatpush1.msra.mxu0 %v532
    %613 = vmatprep.subr.mxu0 0.0
    %614 = vmatpush1.msra.mxu0 %v533
    %615 = vmatprep.subr.mxu0 0.0
    %616 = vmatpush1.msra.mxu0 %v534
    %617 = vmatprep.subr.mxu0 0.0
    %618 = vmatpush1.msra.mxu0 %v535
    %619 = vmatprep.subr.mxu0 0.0
    %620 = vmatpush1.msra.mxu0 %v536
    %621 = vmatprep.subr.mxu0 0.0
    %622 = vmatpush1.msra.mxu0 %v537
    %623 = vmatprep.subr.mxu0 0.0
    %624 = vmatpush1.msra.mxu0 %v538
    %625 = vmatprep.subr.mxu0 0.0
    %626 = vmatpush1.msra.mxu0 %v539
    %627 = vmatprep.subr.mxu0 0.0
    %628 = vmatpush1.msra.mxu0 %v540
    %629 = vmatprep.subr.mxu0 0.0
    %630 = vmatpush1.msra.mxu0 %v541
    %631 = vmatprep.subr.mxu0 0.0
    %632 = vmatpush1.msra.mxu0 %v542
    %633 = vmatprep.subr.mxu0 0.0
    %634 = vmatpush1.msra.mxu0 %v543
    %635 = vmatprep.subr.mxu0 0.0
    %636 = vmatpush1.msra.mxu0 %v544
    %637 = vmatprep.subr.mxu0 0.0
    %638 = vmatpush1.msra.mxu0 %v545
    %639 = vmatprep.subr.mxu0 0.0
    %640 = vmatpush1.msra.mxu0 %v546
    %641 = vmatprep.subr.mxu0 0.0
    %642 = vmatpush1.msra.mxu0 %v547
    %643 = vmatprep.subr.mxu0 0.0
    %644 = vmatpush1.msra.mxu0 %v548
    %645 = vmatprep.subr.mxu0 0.0
    %646 = vmatpush1.msra.mxu0 %v549
    %647 = vmatprep.subr.mxu0 0.0
    %648 = vmatpush1.msra.mxu0 0.0
    %649 = vmatprep.subr.mxu0 0.0
    %650 = vmatpush1.msra.mxu0 0.0
    %651 = vmatprep.subr.mxu0 0.0
    %652 = vmatpush1.msra.mxu0 0.0
    %653 = vmatprep.subr.mxu0 0.0
    %654 = vmatpush1.msra.mxu0 0.0
    %655 = vmatprep.mubr.f32.mxu0 %v580
    %656 = vmatmul.mubr.f32.gmra.mrb[0].mxu0 %v550
    %v657 = vpop.f32.mrb[0].mxu0
    %v658 = vadd.f32 %v561, %v657
    %v659 = vpop.f32.mrb[0].mxu0
    %660 = vmatprep.mubr.f32.mxu0 %v583
    %661 = vmatmul.mubr.f32.gmra.mrb[0].mxu0 %v552
    %v662 = vpop.f32.mrb[0].mxu0
    %v663 = vadd.f32 %v566, %v662
    %v664 = vpop.f32.mrb[0].mxu0
    %665 = vmatprep.mubr.f32.mxu0 %v586
    %666 = vmatmul.mubr.f32.gmra.mrb[0].mxu0 %v554
    %v667 = vpop.f32.mrb[0].mxu0
    %v668 = vadd.f32 %v571, %v667
    %v669 = vpop.f32.mrb[0].mxu0
    %670 = vmatprep.mubr.f32.mxu0 %v589
    %671 = vmatmul.mubr.f32.gmra.mrb[0].mxu0 %v556
    %v672 = vpop.f32.mrb[0].mxu0
    %v673 = vadd.f32 %v576, %v672
    %v674 = vpop.f32.mrb[0].mxu0
    %675 = vdwg.mxu0
    %v676 = vmax.f32 %v658, 0.0
    %v677 = vmax.f32 %v663, 0.0
    %v678 = vmax.f32 %v668, 0.0
    %v679 = vmax.f32 %v673, 0.0
    %v680 = vld [vmem:[%s3] sm:$0xff]
    %v681 = vld [vmem:[%s3 + $0x8] sm:$0xff]
    %v682 = vld [vmem:[%s3 + $0x10] sm:$0xff]
    %v683 = vld [vmem:[%s3 + $0x18] sm:$0xff]
    %685 = vset.pattern.permute.xlu0 0
    %686 = vperm.xlu0 %685, %v55
    %v687 = vpop.permute.xlu0 %686
    %690 = vset.pattern.permute.xlu0 0
    %691 = vperm.xlu0 %690, %v56
    %v692 = vpop.permute.xlu0 %691
    %695 = vset.pattern.permute.xlu0 0
    %696 = vperm.xlu0 %695, %v57
    %v697 = vpop.permute.xlu0 %696
    %700 = vset.pattern.permute.xlu0 0
    %701 = vperm.xlu0 %700, %v58
    %v702 = vpop.permute.xlu0 %701
    %vm704 = vcmask 261120
    %v706 = vsel %vm704, %v680, 0
    %v709 = vsel %vm704, %v681, 0
    %v712 = vsel %vm704, %v682, 0
    %v715 = vsel %vm704, %v683, 0
    %717 = vmatprep.subr.mxu0 0.0
    %718 = vmatpush1.msra.mxu0 %v676
    %719 = vmatprep.subr.mxu0 0.0
    %720 = vmatpush1.msra.mxu0 %v677
    %721 = vmatprep.subr.mxu0 0.0
    %722 = vmatpush1.msra.mxu0 %v678
    %723 = vmatprep.subr.mxu0 0.0
    %724 = vmatpush1.msra.mxu0 %v679
    %725 = vmatprep.subr.mxu0 0.0
    %726 = vmatpush1.msra.mxu0 0.0
    %727 = vmatprep.subr.mxu0 0.0
    %728 = vmatpush1.msra.mxu0 0.0
    %729 = vmatprep.subr.mxu0 0.0
    %730 = vmatpush1.msra.mxu0 0.0
    %731 = vmatprep.subr.mxu0 0.0
    %732 = vmatpush1.msra.mxu0 0.0
    %733 = vmatprep.subr.mxu0 0.0
    %734 = vmatpush1.msra.mxu0 0.0
    %735 = vmatprep.subr.mxu0 0.0
    %736 = vmatpush1.msra.mxu0 0.0
    %737 = vmatprep.subr.mxu0 0.0
    %738 = vmatpush1.msra.mxu0 0.0
    %739 = vmatprep.subr.mxu0 0.0
    %740 = vmatpush1.msra.mxu0 0.0
    %741 = vmatprep.subr.mxu0 0.0
    %742 = vmatpush1.msra.mxu0 0.0
    %743 = vmatprep.subr.mxu0 0.0
    %744 = vmatpush1.msra.mxu0 0.0
    %745 = vmatprep.subr.mxu0 0.0
    %746 = vmatpush1.msra.mxu0 0.0
    %747 = vmatprep.subr.mxu0 0.0
    %748 = vmatpush1.msra.mxu0 0.0
    %749 = vmatprep.subr.mxu0 0.0
    %750 = vmatpush1.msra.mxu0 0.0
    %751 = vmatprep.subr.mxu0 0.0
    %752 = vmatpush1.msra.mxu0 0.0
    %753 = vmatprep.subr.mxu0 0.0
    %754 = vmatpush1.msra.mxu0 0.0
    %755 = vmatprep.subr.mxu0 0.0
    %756 = vmatpush1.msra.mxu0 0.0
    %757 = vmatprep.subr.mxu0 0.0
    %758 = vmatpush1.msra.mxu0 0.0
    %759 = vmatprep.subr.mxu0 0.0
    %760 = vmatpush1.msra.mxu0 0.0
    %761 = vmatprep.subr.mxu0 0.0
    %762 = vmatpush1.msra.mxu0 0.0
    %763 = vmatprep.subr.mxu0 0.0
    %764 = vmatpush1.msra.mxu0 0.0
    %765 = vmatprep.subr.mxu0 0.0
    %766 = vmatpush1.msra.mxu0 0.0
    %767 = vmatprep.subr.mxu0 0.0
    %768 = vmatpush1.msra.mxu0 0.0
    %769 = vmatprep.subr.mxu0 0.0
    %770 = vmatpush1.msra.mxu0 0.0
    %771 = vmatprep.subr.mxu0 0.0
    %772 = vmatpush1.msra.mxu0 0.0
    %773 = vmatprep.subr.mxu0 0.0
    %774 = vmatpush1.msra.mxu0 0.0
    %775 = vmatprep.subr.mxu0 0.0
    %776 = vmatpush1.msra.mxu0 0.0
    %777 = vmatprep.subr.mxu0 0.0
    %778 = vmatpush1.msra.mxu0 0.0
    %779 = vmatprep.subr.mxu0 0.0
    %780 = vmatpush1.msra.mxu0 0.0
    %781 = vmatprep.mubr.f32.mxu0 0.0
    %782 = vmatmul.mubr.f32.gmra.mrb[0].mxu0 %v706
    %v783 = vpop.f32.mrb[0].mxu0
    %v784 = vadd.f32 %v687, %v783
    %v785 = vpop.f32.mrb[0].mxu0
    %786 = vmatprep.mubr.f32.mxu0 0.0
    %787 = vmatmul.mubr.f32.gmra.mrb[0].mxu0 %v709
    %v788 = vpop.f32.mrb[0].mxu0
    %v789 = vadd.f32 %v692, %v788
    %v790 = vpop.f32.mrb[0].mxu0
    %791 = vmatprep.mubr.f32.mxu0 0.0
    %792 = vmatmul.mubr.f32.gmra.mrb[0].mxu0 %v712
    %v793 = vpop.f32.mrb[0].mxu0
    %v794 = vadd.f32 %v697, %v793
    %v795 = vpop.f32.mrb[0].mxu0
    %796 = vmatprep.mubr.f32.mxu0 0.0
    %797 = vmatmul.mubr.f32.gmra.mrb[0].mxu0 %v715
    %v798 = vpop.f32.mrb[0].mxu0
    %v799 = vadd.f32 %v702, %v798
    %v800 = vpop.f32.mrb[0].mxu0
    %801 = vdwg.mxu0
    %v802 = vmax.f32 %v784, 0.0
    %v803 = vmax.f32 %v789, 0.0
    %v804 = vmax.f32 %v794, 0.0
    %v805 = vmax.f32 %v799, 0.0
    %807 = vset.pattern.permute.xlu0 0
    %808 = vperm.xlu0 %807, %v59
    %v809 = vpop.permute.xlu0 %808
    %812 = vset.pattern.permute.xlu0 0
    %813 = vperm.xlu0 %812, %v60
    %v814 = vpop.permute.xlu0 %813
    %817 = vset.pattern.permute.xlu0 0
    %818 = vperm.xlu0 %817, %v61
    %v819 = vpop.permute.xlu0 %818
    %822 = vset.pattern.permute.xlu0 0
    %823 = vperm.xlu0 %822, %v62
    %v824 = vpop.permute.xlu0 %823
    %v826 = vmul.f32 %v802, %v809
    %v827 = vmul.f32 %v803, %v814
    %v828 = vmul.f32 %v804, %v819
    %v829 = vmul.f32 %v805, %v824
    %vm830 = vcmask 15360
    %v831 = vsel %vm830, %v826, 0.0
    %v832 = vsel %vm830, %v827, 0.0
    %v833 = vadd.f32 %v831, %v832
    %v834 = vsel %vm830, %v828, 0.0
    %v835 = vadd.f32 %v833, %v834
    %v836 = vsel %vm830, %v829, 0.0
    %v837 = vadd.f32 %v835, %v836
    %v838 = vrot.slane %v837, 4
    %v839 = vadd.f32 %v837, %v838
    %v840 = vrot.slane %v839, 2
    %v841 = vadd.f32 %v839, %v840
    %v842 = vrot.slane %v841, 1
    %v843 = vadd.f32 %v841, %v842
    %845 = vset.pattern.permute.xlu0 0
    %846 = vperm.xlu0 %845, %v63
    %v847 = vpop.permute.xlu0 %846
    %v849 = vadd.f32 %v843, %v847
    %vm850 = vcmask 8192
    %851 = vst.msk [vmem:[#allocation2] sm:$0x1] %vm850, %v849
    // Predicated region
    $region22: #{net_forward.1} parent=1 // pred_check
      _
    $region23: #{net_forward.1} parent=1 // pred_check_branch
      %853 = sbr.rel (0) target = $region25
    $region24: #{net_forward.1} parent=1 // pred_region
      %s855 = ssub.s32 16, 16
      %856 = vsyncadd [#allocation3], %s855
      %s858 = sshll.u32 [#allocation2], 4
      %s859 = int_to_ptr.vmem [resolvable:$true] %s858
      %861 = dma.vmem_to_hbm [thread:$0]  %s859, 16, %s5, [#allocation3]
    $region25: #{net_forward.1} parent=1 // pred_fallthru
      _
    // Predicated region
    $region26: #{net_forward.1} parent=1 // pred_check
      _
    $region27: #{net_forward.1} parent=1 // pred_check_branch
      %863 = sbr.rel (0) target = $region29
    $region28: #{net_forward.1} parent=1 // pred_region
      %864 = dma.done [#allocation3], 16
    $region29: #{net_forward.1} parent=1 // pred_fallthru
      _
    %865 = vsyncpa [#allocation3], 1

</llo_original>
